<compile_context>
chip_gen: v5e
topology: v5e:2x2
jax: 0.10.0
libtpu: 0.0.40
codegen_flags: <defaults>
</compile_context>

<pallas_src>
import functools

import numpy as np
import jax
import jax.numpy as jnp
from jax.experimental import pallas as pl
from jax.experimental.pallas import tpu as pltpu

B, H, W = 2, 16, 16       # batch, lattice height, lattice width
C_HID = 8                 # hidden channels of the coupling net (power of two)
PARITY = 0


def make_checker_mask(shape, parity):
    checker = np.ones(shape, dtype=np.float32) * (1 - parity)
    checker[::2, ::2] = parity
    checker[1::2, 1::2] = parity
    return checker


def _tree_sum(terms):
    # Balanced pairwise accumulation (shorter dep chain than a serial 9-deep fold).
    terms = list(terms)
    while len(terms) > 1:
        nxt = [terms[i] + terms[i + 1] for i in range(0, len(terms) - 1, 2)]
        if len(terms) % 2:
            nxt.append(terms[-1])
        terms = nxt
    return terms[0]


# Row layout of the packed constant slab (see _pack_consts).
_W1_ROW, _W2S_ROW, _W2T_ROW = 0, 9, 18
_B1_ROW, _B2S_ROW, _B2T_ROW = 27, 28, 29
_CONST_ROWS = 32


def _make_kernel(Bn, Hn, Wn, C, parity):
    R = Bn * Hn            # batch images stacked along sublanes
    L = C * Wn             # hidden channels packed along lanes (lane-dense)
    f32 = jnp.float32
    assert Hn & (Hn - 1) == 0 and Wn % 2 == 0, "H must be a power of two, W even"

    def kernel(xw_ref, c_ref, fx_ref, logj_ref):
        xw = xw_ref[...]                                   # (R, L) raw x, lane-replicated

        # Checkerboard mask generated in-kernel (iota parity) -> no mask DMA.
        ri = jax.lax.broadcasted_iota(jnp.int32, (R, L), 0)
        ci = jax.lax.broadcasted_iota(jnp.int32, (R, L), 1)
        same = ((ri + ci) & 1) == 0                        # row/col parity equal
        m_wide = jnp.where(same, float(parity), float(1 - parity)).astype(f32)
        x_frozen_w = m_wide * xw                           # frozen input, per channel block

        # Row validity for +-1 vertical taps: zeroes the conv padding rows, the
        # inter-image boundary rows, and the circular-roll wrap rows.
        r_img = ri & (Hn - 1)
        ok_up = r_img != 0                                 # source row r-1 valid
        ok_dn = r_img != Hn - 1                            # source row r+1 valid

        def vshift3(a):
            # (reads r-1, r, r+1): 2 sublane rolls + 2 selects, hoisted per conv.
            up = jnp.where(ok_up, pltpu.roll(a, 1, axis=0), 0.0)
            dn = jnp.where(ok_dn, pltpu.roll(a, R - 1, axis=0), 0.0)
            return up, a, dn

        def hshift(a, kx):
            # b[., l] = a[., l + (kx - 1)].  Wrapped / cross-block lanes carry zero
            # weight (column padding folded into the lane-packed taps) -> no mask.
            if kx == 0:
                return pltpu.roll(a, 1, axis=1)
            if kx == 2:
                return pltpu.roll(a, L - 1, axis=1)
            return a

        def wrow(i):                                       # const row i, sublane-broadcast
            return jnp.broadcast_to(c_ref[i:i + 1, :], (R, L))

        # ---- conv1: 1 -> C, 3x3, zero pad 1, tanh (lane-packed, full-vreg MACs).
        v1 = vshift3(x_frozen_w)
        terms1 = [hshift(v1[ky], kx) * wrow(_W1_ROW + ky * 3 + kx)
                  for ky in range(3) for kx in range(3)]
        hidden = jnp.tanh(_tree_sum(terms1) + wrow(_B1_ROW))          # (R, L)

        # ---- conv2: C -> 2 (s, t), 3x3, zero pad 1.
        v2 = vshift3(hidden)
        s_terms, t_terms = [], []
        for ky in range(3):
            for kx in range(3):
                k = ky * 3 + kx
                hs = hshift(v2[ky], kx)
                s_terms.append(hs * wrow(_W2S_ROW + k))
                t_terms.append(hs * wrow(_W2T_ROW + k))
        s_acc, t_acc = _tree_sum(s_terms), _tree_sum(t_terms)

        def lane_block_sum(a):
            # Sum the C channel blocks of width Wn: log2(C) roll+add lane folds (XLU);
            # lanes [0, Wn) of the result hold the totals.
            step = L // 2
            while step >= Wn:
                a = a + pltpu.roll(a, step, axis=1)
                step //= 2
            return a

        s_map = (lane_block_sum(s_acc) + c_ref[_B2S_ROW:_B2S_ROW + 1, :])[:, :Wn]
        t_map = (lane_block_sum(t_acc) + c_ref[_B2T_ROW:_B2T_ROW + 1, :])[:, :Wn]

        # ---- affine coupling on the narrow (R, Wn) slab.
        x_n = xw[:, :Wn]
        m_n = m_wide[:, :Wn]
        mf_n = 1.0 - m_n
        x_frozen_n = m_n * x_n
        fx_ref[...] = mf_n * t_map + (mf_n * x_n) * jnp.exp(s_map) + x_frozen_n

        # ---- logJ fully reduced in-kernel -> (B,) SMEM scalars (no second VMEM
        # output, no follow-on XLA reduction dispatch).
        mfs = mf_n * s_map
        for b in range(Bn):
            logj_ref[b] = jnp.sum(mfs[b * Hn:(b + 1) * Hn, :])

    return kernel


def _pack_consts(w1, b1, w2, b2, C, Wn):
    """Pack all conv weights/biases into ONE lane-dense (32, C*Wn) f32 slab."""
    f32 = jnp.float32
    L = C * Wn

    def lane_pack(wmat):                                   # (C, 9) -> (9, L)
        return jnp.repeat(wmat.T, Wn, axis=1)

    # Horizontal zero padding of the 3x3 conv folded into the lane-packed taps
    # (also zeroes channel-block boundary / roll-wrap lanes).
    lane_pos = np.arange(L) % Wn
    col_ok = {dx: jnp.asarray(((lane_pos + dx >= 0) & (lane_pos + dx < Wn))
                              .astype(np.float32)) for dx in (-1, 0, 1)}
    tap_mask = jnp.stack([col_ok[kx - 1] for ky in range(3) for kx in range(3)])  # (9, L)

    w1_lane = lane_pack(w1.reshape(C, 9).astype(f32)) * tap_mask                  # (9, L)
    w2s_lane = lane_pack(w2[0].reshape(C, 9).astype(f32)) * tap_mask              # (9, L)
    w2t_lane = lane_pack(w2[1].reshape(C, 9).astype(f32)) * tap_mask              # (9, L)
    b1_lane = jnp.repeat(b1.reshape(1, C).astype(f32), Wn, axis=1)                # (1, L)
    b2s_row = jnp.full((1, L), b2[0], f32)
    b2t_row = jnp.full((1, L), b2[1], f32)
    pad = jnp.zeros((_CONST_ROWS - 30, L), f32)
    return jnp.concatenate(
        [w1_lane, w2s_lane, w2t_lane, b1_lane, b2s_row, b2t_row, pad], axis=0)    # (32, L)


@functools.partial(jax.jit, static_argnames=("parity",))
def affine_coupling_forward(x, w1, b1, w2, b2, *, parity=0):
    Bn, Hn, Wn = x.shape
    C = w1.shape[0]
    assert C & (C - 1) == 0, "C_HID must be a power of two for the lane-block fold"
    R, L = Bn * Hn, C * Wn
    f32 = jnp.float32

    consts = _pack_consts(w1, b1, w2, b2, C, Wn)                        # (32, L)
    # Lane-replicate x into the C channel blocks up front (layout plumbing fused
    # into the jitted prologue) -> no 8-way lane concat inside the kernel.
    x_wide = jnp.tile(x.reshape(R, Wn).astype(f32), (1, C))             # (R, L)

    vmem = pl.BlockSpec(memory_space=pltpu.MemorySpace.VMEM)
    smem = pl.BlockSpec(memory_space=pltpu.MemorySpace.SMEM)
    fx2, logJ = pl.pallas_call(
        _make_kernel(Bn, Hn, Wn, C, parity),
        out_shape=(jax.ShapeDtypeStruct((R, Wn), f32),   # fx
                   jax.ShapeDtypeStruct((Bn,), f32)),    # per-image logJ scalars
        in_specs=[vmem, vmem],
        out_specs=(vmem, smem),
    )(x_wide, consts)
    # TODO(synk): when this layer is applied as a stack of couplings (normalizing
    # flow), fuse several layers into one pallas_call (all layers' taps in one const
    # slab; hidden slab stays resident in VMEM) to amortize the per-call fixed cost.
    # TODO(synk): for production batches >> 2, add a batch grid axis with
    # dimension_semantics=("parallel",) so v7x's second TensorCore gets used.
    return fx2.reshape(Bn, Hn, Wn), logJ


def reference_forward(x, mask, w1, b1, w2, b2):
    # Pure-JAX reference identical to the PyTorch module semantics.
    mf = 1.0 - mask
    x_frozen = mask[None] * x
    x_active = mf[None] * x
    inp = x_frozen[:, None]                                    # NCHW (B,1,H,W)
    dn = ('NCHW', 'OIHW', 'NCHW')
    h = jax.lax.conv_general_dilated(inp, w1, (1, 1), 'SAME', dimension_numbers=dn,
                                     precision=jax.lax.Precision.HIGHEST)
    h = jnp.tanh(h + b1[None, :, None, None])
    out = jax.lax.conv_general_dilated(h, w2, (1, 1), 'SAME', dimension_numbers=dn,
                                       precision=jax.lax.Precision.HIGHEST)
    out = out + b2[None, :, None, None]
    s, t = out[:, 0], out[:, 1]
    fx = mf[None] * t + x_active * jnp.exp(s) + x_frozen
    logJ = jnp.sum(mf[None] * s, axis=(1, 2))
    return fx, logJ


if __name__ == "__main__":
    key = jax.random.PRNGKey(0)
    k1, k2, k3, k4, kx = jax.random.split(key, 5)
    # Deterministic synthetic parameters for the coupling net.
    w1 = jax.random.normal(k1, (C_HID, 1, 3, 3), jnp.float32) * 0.3
    b1 = jax.random.normal(k2, (C_HID,), jnp.float32) * 0.1
    w2 = jax.random.normal(k3, (2, C_HID, 3, 3), jnp.float32) * 0.3
    b2 = jax.random.normal(k4, (2,), jnp.float32) * 0.1
    x = jax.random.normal(kx, (B, H, W), jnp.float32)

    fx, logJ = affine_coupling_forward(x, w1, b1, w2, b2, parity=PARITY)
    jax.block_until_ready((fx, logJ))

    mask = jnp.asarray(make_checker_mask((H, W), PARITY))
    fx_ref, logJ_ref = reference_forward(x, mask, w1, b1, w2, b2)
    np.testing.assert_allclose(np.asarray(fx), np.asarray(fx_ref), rtol=1e-3, atol=1e-3)
    np.testing.assert_allclose(np.asarray(logJ), np.asarray(logJ_ref), rtol=1e-3, atol=1e-3)

    print("KERNEL_OK")
</pallas_src>

<mosaic_0001>
module attributes {stable_mosaic.version = 11 : i64} {
  func.func @kernel(%arg0: memref<32x128xf32, #tpu.memory_space<vmem>>, %arg1: memref<32x128xf32, #tpu.memory_space<vmem>>, %arg2: memref<32x16xf32, #tpu.memory_space<vmem>>, %arg3: memref<2xf32, #tpu.memory_space<smem>>) attributes {dimension_semantics = [], scalar_prefetch = 0 : i64, scratch_operands = 0 : i64, tpu.core_type = #tpu.core_type<tc>} {
    %c0 = arith.constant 0 : index
    %c0_0 = arith.constant 0 : index
    %0 = vector.load %arg0[%c0, %c0_0] : memref<32x128xf32, #tpu.memory_space<vmem>>, vector<32x128xf32>
    %1 = tpu.iota {dimensions = array<i32: 0>} : vector<32x128xi32>
    %2 = tpu.iota {dimensions = array<i32: 1>} : vector<32x128xi32>
    %3 = arith.addi %1, %2 : vector<32x128xi32>
    %c1_i32 = arith.constant 1 : i32
    %4 = vector.broadcast %c1_i32 : i32 to vector<32x128xi32>
    %5 = arith.andi %3, %4 : vector<32x128xi32>
    %c0_i32 = arith.constant 0 : i32
    %6 = vector.broadcast %c0_i32 : i32 to vector<32x128xi32>
    %7 = arith.cmpi eq, %5, %6 : vector<32x128xi32>
    %cst = arith.constant 0.000000e+00 : f32
    %cst_1 = arith.constant 1.000000e+00 : f32
    %8 = vector.broadcast %cst : f32 to vector<32x128xf32>
    %9 = vector.broadcast %cst_1 : f32 to vector<32x128xf32>
    %10 = arith.select %7, %8, %9 : vector<32x128xi1>, vector<32x128xf32>
    %11 = arith.mulf %10, %0 : vector<32x128xf32>
    %c15_i32 = arith.constant 15 : i32
    %12 = vector.broadcast %c15_i32 : i32 to vector<32x128xi32>
    %13 = arith.andi %1, %12 : vector<32x128xi32>
    %c0_i32_2 = arith.constant 0 : i32
    %14 = vector.broadcast %c0_i32_2 : i32 to vector<32x128xi32>
    %15 = arith.cmpi ne, %13, %14 : vector<32x128xi32>
    %c15_i32_3 = arith.constant 15 : i32
    %16 = vector.broadcast %c15_i32_3 : i32 to vector<32x128xi32>
    %17 = arith.cmpi ne, %13, %16 : vector<32x128xi32>
    %c1_i32_4 = arith.constant 1 : i32
    %18 = tpu.dynamic_rotate %11 by %c1_i32_4 dim 0 : vector<32x128xf32>, i32 -> vector<32x128xf32>
    %cst_5 = arith.constant 0.000000e+00 : f32
    %19 = vector.broadcast %cst_5 : f32 to vector<32x128xf32>
    %20 = arith.select %15, %18, %19 : vector<32x128xi1>, vector<32x128xf32>
    %c31_i32 = arith.constant 31 : i32
    %21 = tpu.dynamic_rotate %11 by %c31_i32 dim 0 : vector<32x128xf32>, i32 -> vector<32x128xf32>
    %cst_6 = arith.constant 0.000000e+00 : f32
    %22 = vector.broadcast %cst_6 : f32 to vector<32x128xf32>
    %23 = arith.select %17, %21, %22 : vector<32x128xi1>, vector<32x128xf32>
    %c1_i32_7 = arith.constant 1 : i32
    %24 = tpu.dynamic_rotate %20 by %c1_i32_7 dim 1 : vector<32x128xf32>, i32 -> vector<32x128xf32>
    %c0_8 = arith.constant 0 : index
    %c0_9 = arith.constant 0 : index
    %25 = vector.load %arg1[%c0_8, %c0_9] : memref<32x128xf32, #tpu.memory_space<vmem>>, vector<1x128xf32>
    %26 = vector.shape_cast %25 : vector<1x128xf32> to vector<1x128xf32>
    %27 = vector.broadcast %26 : vector<1x128xf32> to vector<32x128xf32>
    %28 = arith.mulf %24, %27 : vector<32x128xf32>
    %c1 = arith.constant 1 : index
    %c0_10 = arith.constant 0 : index
    %29 = vector.load %arg1[%c1, %c0_10] : memref<32x128xf32, #tpu.memory_space<vmem>>, vector<1x128xf32>
    %30 = vector.shape_cast %29 : vector<1x128xf32> to vector<1x128xf32>
    %31 = vector.broadcast %30 : vector<1x128xf32> to vector<32x128xf32>
    %32 = arith.mulf %20, %31 : vector<32x128xf32>
    %c127_i32 = arith.constant 127 : i32
    %33 = tpu.dynamic_rotate %20 by %c127_i32 dim 1 : vector<32x128xf32>, i32 -> vector<32x128xf32>
    %c2 = arith.constant 2 : index
    %c0_11 = arith.constant 0 : index
    %34 = vector.load %arg1[%c2, %c0_11] : memref<32x128xf32, #tpu.memory_space<vmem>>, vector<1x128xf32>
    %35 = vector.shape_cast %34 : vector<1x128xf32> to vector<1x128xf32>
    %36 = vector.broadcast %35 : vector<1x128xf32> to vector<32x128xf32>
    %37 = arith.mulf %33, %36 : vector<32x128xf32>
    %c1_i32_12 = arith.constant 1 : i32
    %38 = tpu.dynamic_rotate %11 by %c1_i32_12 dim 1 : vector<32x128xf32>, i32 -> vector<32x128xf32>
    %c3 = arith.constant 3 : index
    %c0_13 = arith.constant 0 : index
    %39 = vector.load %arg1[%c3, %c0_13] : memref<32x128xf32, #tpu.memory_space<vmem>>, vector<1x128xf32>
    %40 = vector.shape_cast %39 : vector<1x128xf32> to vector<1x128xf32>
    %41 = vector.broadcast %40 : vector<1x128xf32> to vector<32x128xf32>
    %42 = arith.mulf %38, %41 : vector<32x128xf32>
    %c4 = arith.constant 4 : index
    %c0_14 = arith.constant 0 : index
    %43 = vector.load %arg1[%c4, %c0_14] : memref<32x128xf32, #tpu.memory_space<vmem>>, vector<1x128xf32>
    %44 = vector.shape_cast %43 : vector<1x128xf32> to vector<1x128xf32>
    %45 = vector.broadcast %44 : vector<1x128xf32> to vector<32x128xf32>
    %46 = arith.mulf %11, %45 : vector<32x128xf32>
    %c127_i32_15 = arith.constant 127 : i32
    %47 = tpu.dynamic_rotate %11 by %c127_i32_15 dim 1 : vector<32x128xf32>, i32 -> vector<32x128xf32>
    %c5 = arith.constant 5 : index
    %c0_16 = arith.constant 0 : index
    %48 = vector.load %arg1[%c5, %c0_16] : memref<32x128xf32, #tpu.memory_space<vmem>>, vector<1x128xf32>
    %49 = vector.shape_cast %48 : vector<1x128xf32> to vector<1x128xf32>
    %50 = vector.broadcast %49 : vector<1x128xf32> to vector<32x128xf32>
    %51 = arith.mulf %47, %50 : vector<32x128xf32>
    %c1_i32_17 = arith.constant 1 : i32
    %52 = tpu.dynamic_rotate %23 by %c1_i32_17 dim 1 : vector<32x128xf32>, i32 -> vector<32x128xf32>
    %c6 = arith.constant 6 : index
    %c0_18 = arith.constant 0 : index
    %53 = vector.load %arg1[%c6, %c0_18] : memref<32x128xf32, #tpu.memory_space<vmem>>, vector<1x128xf32>
    %54 = vector.shape_cast %53 : vector<1x128xf32> to vector<1x128xf32>
    %55 = vector.broadcast %54 : vector<1x128xf32> to vector<32x128xf32>
    %56 = arith.mulf %52, %55 : vector<32x128xf32>
    %c7 = arith.constant 7 : index
    %c0_19 = arith.constant 0 : index
    %57 = vector.load %arg1[%c7, %c0_19] : memref<32x128xf32, #tpu.memory_space<vmem>>, vector<1x128xf32>
    %58 = vector.shape_cast %57 : vector<1x128xf32> to vector<1x128xf32>
    %59 = vector.broadcast %58 : vector<1x128xf32> to vector<32x128xf32>
    %60 = arith.mulf %23, %59 : vector<32x128xf32>
    %c127_i32_20 = arith.constant 127 : i32
    %61 = tpu.dynamic_rotate %23 by %c127_i32_20 dim 1 : vector<32x128xf32>, i32 -> vector<32x128xf32>
    %c8 = arith.constant 8 : index
    %c0_21 = arith.constant 0 : index
    %62 = vector.load %arg1[%c8, %c0_21] : memref<32x128xf32, #tpu.memory_space<vmem>>, vector<1x128xf32>
    %63 = vector.shape_cast %62 : vector<1x128xf32> to vector<1x128xf32>
    %64 = vector.broadcast %63 : vector<1x128xf32> to vector<32x128xf32>
    %65 = arith.mulf %61, %64 : vector<32x128xf32>
    %66 = arith.addf %28, %32 : vector<32x128xf32>
    %67 = arith.addf %37, %42 : vector<32x128xf32>
    %68 = arith.addf %46, %51 : vector<32x128xf32>
    %69 = arith.addf %56, %60 : vector<32x128xf32>
    %70 = arith.addf %66, %67 : vector<32x128xf32>
    %71 = arith.addf %68, %69 : vector<32x128xf32>
    %72 = arith.addf %70, %71 : vector<32x128xf32>
    %73 = arith.addf %72, %65 : vector<32x128xf32>
    %c27 = arith.constant 27 : index
    %c0_22 = arith.constant 0 : index
    %74 = vector.load %arg1[%c27, %c0_22] : memref<32x128xf32, #tpu.memory_space<vmem>>, vector<1x128xf32>
    %75 = vector.shape_cast %74 : vector<1x128xf32> to vector<1x128xf32>
    %76 = vector.broadcast %75 : vector<1x128xf32> to vector<32x128xf32>
    %77 = arith.addf %73, %76 : vector<32x128xf32>
    %78 = math.tanh %77 : vector<32x128xf32>
    %c1_i32_23 = arith.constant 1 : i32
    %79 = tpu.dynamic_rotate %78 by %c1_i32_23 dim 0 : vector<32x128xf32>, i32 -> vector<32x128xf32>
    %cst_24 = arith.constant 0.000000e+00 : f32
    %80 = vector.broadcast %cst_24 : f32 to vector<32x128xf32>
    %81 = arith.select %15, %79, %80 : vector<32x128xi1>, vector<32x128xf32>
    %c31_i32_25 = arith.constant 31 : i32
    %82 = tpu.dynamic_rotate %78 by %c31_i32_25 dim 0 : vector<32x128xf32>, i32 -> vector<32x128xf32>
    %cst_26 = arith.constant 0.000000e+00 : f32
    %83 = vector.broadcast %cst_26 : f32 to vector<32x128xf32>
    %84 = arith.select %17, %82, %83 : vector<32x128xi1>, vector<32x128xf32>
    %c1_i32_27 = arith.constant 1 : i32
    %85 = tpu.dynamic_rotate %81 by %c1_i32_27 dim 1 : vector<32x128xf32>, i32 -> vector<32x128xf32>
    %c9 = arith.constant 9 : index
    %c0_28 = arith.constant 0 : index
    %86 = vector.load %arg1[%c9, %c0_28] : memref<32x128xf32, #tpu.memory_space<vmem>>, vector<1x128xf32>
    %87 = vector.shape_cast %86 : vector<1x128xf32> to vector<1x128xf32>
    %88 = vector.broadcast %87 : vector<1x128xf32> to vector<32x128xf32>
    %89 = arith.mulf %85, %88 : vector<32x128xf32>
    %c18 = arith.constant 18 : index
    %c0_29 = arith.constant 0 : index
    %90 = vector.load %arg1[%c18, %c0_29] : memref<32x128xf32, #tpu.memory_space<vmem>>, vector<1x128xf32>
    %91 = vector.shape_cast %90 : vector<1x128xf32> to vector<1x128xf32>
    %92 = vector.broadcast %91 : vector<1x128xf32> to vector<32x128xf32>
    %93 = arith.mulf %85, %92 : vector<32x128xf32>
    %c10 = arith.constant 10 : index
    %c0_30 = arith.constant 0 : index
    %94 = vector.load %arg1[%c10, %c0_30] : memref<32x128xf32, #tpu.memory_space<vmem>>, vector<1x128xf32>
    %95 = vector.shape_cast %94 : vector<1x128xf32> to vector<1x128xf32>
    %96 = vector.broadcast %95 : vector<1x128xf32> to vector<32x128xf32>
    %97 = arith.mulf %81, %96 : vector<32x128xf32>
    %c19 = arith.constant 19 : index
    %c0_31 = arith.constant 0 : index
    %98 = vector.load %arg1[%c19, %c0_31] : memref<32x128xf32, #tpu.memory_space<vmem>>, vector<1x128xf32>
    %99 = vector.shape_cast %98 : vector<1x128xf32> to vector<1x128xf32>
    %100 = vector.broadcast %99 : vector<1x128xf32> to vector<32x128xf32>
    %101 = arith.mulf %81, %100 : vector<32x128xf32>
    %c127_i32_32 = arith.constant 127 : i32
    %102 = tpu.dynamic_rotate %81 by %c127_i32_32 dim 1 : vector<32x128xf32>, i32 -> vector<32x128xf32>
    %c11 = arith.constant 11 : index
    %c0_33 = arith.constant 0 : index
    %103 = vector.load %arg1[%c11, %c0_33] : memref<32x128xf32, #tpu.memory_space<vmem>>, vector<1x128xf32>
    %104 = vector.shape_cast %103 : vector<1x128xf32> to vector<1x128xf32>
    %105 = vector.broadcast %104 : vector<1x128xf32> to vector<32x128xf32>
    %106 = arith.mulf %102, %105 : vector<32x128xf32>
    %c20 = arith.constant 20 : index
    %c0_34 = arith.constant 0 : index
    %107 = vector.load %arg1[%c20, %c0_34] : memref<32x128xf32, #tpu.memory_space<vmem>>, vector<1x128xf32>
    %108 = vector.shape_cast %107 : vector<1x128xf32> to vector<1x128xf32>
    %109 = vector.broadcast %108 : vector<1x128xf32> to vector<32x128xf32>
    %110 = arith.mulf %102, %109 : vector<32x128xf32>
    %c1_i32_35 = arith.constant 1 : i32
    %111 = tpu.dynamic_rotate %78 by %c1_i32_35 dim 1 : vector<32x128xf32>, i32 -> vector<32x128xf32>
    %c12 = arith.constant 12 : index
    %c0_36 = arith.constant 0 : index
    %112 = vector.load %arg1[%c12, %c0_36] : memref<32x128xf32, #tpu.memory_space<vmem>>, vector<1x128xf32>
    %113 = vector.shape_cast %112 : vector<1x128xf32> to vector<1x128xf32>
    %114 = vector.broadcast %113 : vector<1x128xf32> to vector<32x128xf32>
    %115 = arith.mulf %111, %114 : vector<32x128xf32>
    %c21 = arith.constant 21 : index
    %c0_37 = arith.constant 0 : index
    %116 = vector.load %arg1[%c21, %c0_37] : memref<32x128xf32, #tpu.memory_space<vmem>>, vector<1x128xf32>
    %117 = vector.shape_cast %116 : vector<1x128xf32> to vector<1x128xf32>
    %118 = vector.broadcast %117 : vector<1x128xf32> to vector<32x128xf32>
    %119 = arith.mulf %111, %118 : vector<32x128xf32>
    %c13 = arith.constant 13 : index
    %c0_38 = arith.constant 0 : index
    %120 = vector.load %arg1[%c13, %c0_38] : memref<32x128xf32, #tpu.memory_space<vmem>>, vector<1x128xf32>
    %121 = vector.shape_cast %120 : vector<1x128xf32> to vector<1x128xf32>
    %122 = vector.broadcast %121 : vector<1x128xf32> to vector<32x128xf32>
    %123 = arith.mulf %78, %122 : vector<32x128xf32>
    %c22 = arith.constant 22 : index
    %c0_39 = arith.constant 0 : index
    %124 = vector.load %arg1[%c22, %c0_39] : memref<32x128xf32, #tpu.memory_space<vmem>>, vector<1x128xf32>
    %125 = vector.shape_cast %124 : vector<1x128xf32> to vector<1x128xf32>
    %126 = vector.broadcast %125 : vector<1x128xf32> to vector<32x128xf32>
    %127 = arith.mulf %78, %126 : vector<32x128xf32>
    %c127_i32_40 = arith.constant 127 : i32
    %128 = tpu.dynamic_rotate %78 by %c127_i32_40 dim 1 : vector<32x128xf32>, i32 -> vector<32x128xf32>
    %c14 = arith.constant 14 : index
    %c0_41 = arith.constant 0 : index
    %129 = vector.load %arg1[%c14, %c0_41] : memref<32x128xf32, #tpu.memory_space<vmem>>, vector<1x128xf32>
    %130 = vector.shape_cast %129 : vector<1x128xf32> to vector<1x128xf32>
    %131 = vector.broadcast %130 : vector<1x128xf32> to vector<32x128xf32>
    %132 = arith.mulf %128, %131 : vector<32x128xf32>
    %c23 = arith.constant 23 : index
    %c0_42 = arith.constant 0 : index
    %133 = vector.load %arg1[%c23, %c0_42] : memref<32x128xf32, #tpu.memory_space<vmem>>, vector<1x128xf32>
    %134 = vector.shape_cast %133 : vector<1x128xf32> to vector<1x128xf32>
    %135 = vector.broadcast %134 : vector<1x128xf32> to vector<32x128xf32>
    %136 = arith.mulf %128, %135 : vector<32x128xf32>
    %c1_i32_43 = arith.constant 1 : i32
    %137 = tpu.dynamic_rotate %84 by %c1_i32_43 dim 1 : vector<32x128xf32>, i32 -> vector<32x128xf32>
    %c15 = arith.constant 15 : index
    %c0_44 = arith.constant 0 : index
    %138 = vector.load %arg1[%c15, %c0_44] : memref<32x128xf32, #tpu.memory_space<vmem>>, vector<1x128xf32>
    %139 = vector.shape_cast %138 : vector<1x128xf32> to vector<1x128xf32>
    %140 = vector.broadcast %139 : vector<1x128xf32> to vector<32x128xf32>
    %141 = arith.mulf %137, %140 : vector<32x128xf32>
    %c24 = arith.constant 24 : index
    %c0_45 = arith.constant 0 : index
    %142 = vector.load %arg1[%c24, %c0_45] : memref<32x128xf32, #tpu.memory_space<vmem>>, vector<1x128xf32>
    %143 = vector.shape_cast %142 : vector<1x128xf32> to vector<1x128xf32>
    %144 = vector.broadcast %143 : vector<1x128xf32> to vector<32x128xf32>
    %145 = arith.mulf %137, %144 : vector<32x128xf32>
    %c16 = arith.constant 16 : index
    %c0_46 = arith.constant 0 : index
    %146 = vector.load %arg1[%c16, %c0_46] : memref<32x128xf32, #tpu.memory_space<vmem>>, vector<1x128xf32>
    %147 = vector.shape_cast %146 : vector<1x128xf32> to vector<1x128xf32>
    %148 = vector.broadcast %147 : vector<1x128xf32> to vector<32x128xf32>
    %149 = arith.mulf %84, %148 : vector<32x128xf32>
    %c25 = arith.constant 25 : index
    %c0_47 = arith.constant 0 : index
    %150 = vector.load %arg1[%c25, %c0_47] : memref<32x128xf32, #tpu.memory_space<vmem>>, vector<1x128xf32>
    %151 = vector.shape_cast %150 : vector<1x128xf32> to vector<1x128xf32>
    %152 = vector.broadcast %151 : vector<1x128xf32> to vector<32x128xf32>
    %153 = arith.mulf %84, %152 : vector<32x128xf32>
    %c127_i32_48 = arith.constant 127 : i32
    %154 = tpu.dynamic_rotate %84 by %c127_i32_48 dim 1 : vector<32x128xf32>, i32 -> vector<32x128xf32>
    %c17 = arith.constant 17 : index
    %c0_49 = arith.constant 0 : index
    %155 = vector.load %arg1[%c17, %c0_49] : memref<32x128xf32, #tpu.memory_space<vmem>>, vector<1x128xf32>
    %156 = vector.shape_cast %155 : vector<1x128xf32> to vector<1x128xf32>
    %157 = vector.broadcast %156 : vector<1x128xf32> to vector<32x128xf32>
    %158 = arith.mulf %154, %157 : vector<32x128xf32>
    %c26 = arith.constant 26 : index
    %c0_50 = arith.constant 0 : index
    %159 = vector.load %arg1[%c26, %c0_50] : memref<32x128xf32, #tpu.memory_space<vmem>>, vector<1x128xf32>
    %160 = vector.shape_cast %159 : vector<1x128xf32> to vector<1x128xf32>
    %161 = vector.broadcast %160 : vector<1x128xf32> to vector<32x128xf32>
    %162 = arith.mulf %154, %161 : vector<32x128xf32>
    %163 = arith.addf %89, %97 : vector<32x128xf32>
    %164 = arith.addf %106, %115 : vector<32x128xf32>
    %165 = arith.addf %123, %132 : vector<32x128xf32>
    %166 = arith.addf %141, %149 : vector<32x128xf32>
    %167 = arith.addf %163, %164 : vector<32x128xf32>
    %168 = arith.addf %165, %166 : vector<32x128xf32>
    %169 = arith.addf %167, %168 : vector<32x128xf32>
    %170 = arith.addf %169, %158 : vector<32x128xf32>
    %171 = arith.addf %93, %101 : vector<32x128xf32>
    %172 = arith.addf %110, %119 : vector<32x128xf32>
    %173 = arith.addf %127, %136 : vector<32x128xf32>
    %174 = arith.addf %145, %153 : vector<32x128xf32>
    %175 = arith.addf %171, %172 : vector<32x128xf32>
    %176 = arith.addf %173, %174 : vector<32x128xf32>
    %177 = arith.addf %175, %176 : vector<32x128xf32>
    %178 = arith.addf %177, %162 : vector<32x128xf32>
    %c64_i32 = arith.constant 64 : i32
    %179 = tpu.dynamic_rotate %170 by %c64_i32 dim 1 : vector<32x128xf32>, i32 -> vector<32x128xf32>
    %180 = arith.addf %170, %179 : vector<32x128xf32>
    %c32_i32 = arith.constant 32 : i32
    %181 = tpu.dynamic_rotate %180 by %c32_i32 dim 1 : vector<32x128xf32>, i32 -> vector<32x128xf32>
    %182 = arith.addf %180, %181 : vector<32x128xf32>
    %c16_i32 = arith.constant 16 : i32
    %183 = tpu.dynamic_rotate %182 by %c16_i32 dim 1 : vector<32x128xf32>, i32 -> vector<32x128xf32>
    %184 = arith.addf %182, %183 : vector<32x128xf32>
    %c28 = arith.constant 28 : index
    %c0_51 = arith.constant 0 : index
    %185 = vector.load %arg1[%c28, %c0_51] : memref<32x128xf32, #tpu.memory_space<vmem>>, vector<1x128xf32>
    %186 = vector.broadcast %185 : vector<1x128xf32> to vector<32x128xf32>
    %187 = arith.addf %184, %186 : vector<32x128xf32>
    %188 = vector.extract_strided_slice %187 {offsets = [0, 0], sizes = [32, 16], strides = [1, 1]} : vector<32x128xf32> to vector<32x16xf32>
    %c64_i32_52 = arith.constant 64 : i32
    %189 = tpu.dynamic_rotate %178 by %c64_i32_52 dim 1 : vector<32x128xf32>, i32 -> vector<32x128xf32>
    %190 = arith.addf %178, %189 : vector<32x128xf32>
    %c32_i32_53 = arith.constant 32 : i32
    %191 = tpu.dynamic_rotate %190 by %c32_i32_53 dim 1 : vector<32x128xf32>, i32 -> vector<32x128xf32>
    %192 = arith.addf %190, %191 : vector<32x128xf32>
    %c16_i32_54 = arith.constant 16 : i32
    %193 = tpu.dynamic_rotate %192 by %c16_i32_54 dim 1 : vector<32x128xf32>, i32 -> vector<32x128xf32>
    %194 = arith.addf %192, %193 : vector<32x128xf32>
    %c29 = arith.constant 29 : index
    %c0_55 = arith.constant 0 : index
    %195 = vector.load %arg1[%c29, %c0_55] : memref<32x128xf32, #tpu.memory_space<vmem>>, vector<1x128xf32>
    %196 = vector.broadcast %195 : vector<1x128xf32> to vector<32x128xf32>
    %197 = arith.addf %194, %196 : vector<32x128xf32>
    %198 = vector.extract_strided_slice %197 {offsets = [0, 0], sizes = [32, 16], strides = [1, 1]} : vector<32x128xf32> to vector<32x16xf32>
    %199 = vector.extract_strided_slice %0 {offsets = [0, 0], sizes = [32, 16], strides = [1, 1]} : vector<32x128xf32> to vector<32x16xf32>
    %200 = vector.extract_strided_slice %10 {offsets = [0, 0], sizes = [32, 16], strides = [1, 1]} : vector<32x128xf32> to vector<32x16xf32>
    %cst_56 = arith.constant 1.000000e+00 : f32
    %201 = vector.broadcast %cst_56 : f32 to vector<32x16xf32>
    %202 = arith.subf %201, %200 : vector<32x16xf32>
    %203 = arith.mulf %200, %199 : vector<32x16xf32>
    %204 = arith.mulf %202, %198 : vector<32x16xf32>
    %205 = arith.mulf %202, %199 : vector<32x16xf32>
    %206 = math.exp %188 : vector<32x16xf32>
    %207 = arith.mulf %205, %206 : vector<32x16xf32>
    %208 = arith.addf %204, %207 : vector<32x16xf32>
    %209 = arith.addf %208, %203 : vector<32x16xf32>
    %c0_57 = arith.constant 0 : index
    %c0_58 = arith.constant 0 : index
    %210 = vector.load %arg2[%c0_57, %c0_58] : memref<32x16xf32, #tpu.memory_space<vmem>>, vector<32x16xf32>
    tpu.vector_store %arg2[%c0_57, %c0_58], %209 {strides = array<i32>} : memref<32x16xf32, #tpu.memory_space<vmem>>, vector<32x16xf32>,
    %211 = arith.mulf %202, %188 : vector<32x16xf32>
    %212 = vector.extract_strided_slice %211 {offsets = [0, 0], sizes = [16, 16], strides = [1, 1]} : vector<32x16xf32> to vector<16x16xf32>
    %213 = vector.shape_cast %212 : vector<16x16xf32> to vector<1x16x16xf32>
    %cst_59 = arith.constant dense<0.000000e+00> : vector<1xf32>
    %214 = vector.multi_reduction <add>, %213, %cst_59 [1, 2] : vector<1x16x16xf32> to vector<1xf32>
    %215 = vector.shape_cast %214 : vector<1xf32> to vector<1x1x1xf32>
    %216 = vector.extract %215[0, 0, 0] : f32 from vector<1x1x1xf32>
    %c0_60 = arith.constant 0 : index
    %217 = memref.load %arg3[%c0_60] : memref<2xf32, #tpu.memory_space<smem>>
    memref.store %216, %arg3[%c0_60] : memref<2xf32, #tpu.memory_space<smem>>
    %218 = vector.extract_strided_slice %211 {offsets = [16, 0], sizes = [16, 16], strides = [1, 1]} : vector<32x16xf32> to vector<16x16xf32>
    %219 = vector.shape_cast %218 : vector<16x16xf32> to vector<1x16x16xf32>
    %cst_61 = arith.constant dense<0.000000e+00> : vector<1xf32>
    %220 = vector.multi_reduction <add>, %219, %cst_61 [1, 2] : vector<1x16x16xf32> to vector<1xf32>
    %221 = vector.shape_cast %220 : vector<1xf32> to vector<1x1x1xf32>
    %222 = vector.extract %221[0, 0, 0] : f32 from vector<1x1x1xf32>
    %c1_62 = arith.constant 1 : index
    %223 = memref.load %arg3[%c1_62] : memref<2xf32, #tpu.memory_space<smem>>
    memref.store %222, %arg3[%c1_62] : memref<2xf32, #tpu.memory_space<smem>>
    return
  }
}

</mosaic_0001>

<llo_original>
// kernel: squeeze.4
$region0: #{squeeze.4}
  %s0 = inlined_call_operand.vmem [shape: f32[8,3,3], index: 0, kind: input, shape index: {}]
  %s1 = inlined_call_operand.vmem [shape: f32[8,9], index: 1, kind: output, shape index: {}]
  $region1: #{squeeze.4} parent=0
    #allocation0 [shape = 'u8[12288]{0}', space=vmem, size = 0x3000, scoped, tag = 'scoped mem for input reshape']
    %s3 = ssub.s32 16, 1
    %s4 = scalar_lea.vmem %s0, 8
    %v5 = vld [vmem:[%s4] sm:%s3]
    %s6 = scalar_lea.vmem [#allocation0], 16
    %7 = vst [vmem:[%s6] sm:%s3] %v5
    %s8 = scalar_lea.vmem %s0, 4
    %v9 = vld [vmem:[%s8] sm:%s3]
    %s10 = scalar_lea.vmem [#allocation0], 8
    %11 = vst [vmem:[%s10] sm:%s3] %v9
    %v12 = vld [vmem:[%s0] sm:%s3]
    %13 = vst [vmem:[#allocation0] sm:%s3] %v12
    %v14 = vld [vmem:[#allocation0] sm:$0x7]
    %vm15 = vcmask 64512
    %16 = vst.msk [vmem:[%s1] sm:$0x7] %vm15, %v14
    %s17 = scalar_lea.vmem [#allocation0], 8
    %v18 = vld [vmem:[%s17] sm:$0x7]
    %vm19 = vcmask 64512
    %s20 = scalar_lea.vmem %s1, 3
    %21 = vst.msk [vmem:[%s20] sm:$0x7] %vm19, %v18
    %s22 = scalar_lea.vmem [#allocation0], 16
    %v23 = vld [vmem:[%s22] sm:$0x7]
    %vm24 = vcmask 64512
    %s25 = scalar_lea.vmem %s1, 6
    %26 = vst.msk [vmem:[%s25] sm:$0x7] %vm24, %v23

// kernel: affine_coupling_forward.1
$region0: #{affine_coupling_forward.1}
  #allocation0 [shape = 'u32[]', space=smem, size = 0x4, offset = 0x4, fixed_abs, tag = 'smem constant byte address 0x4 - core index']
  #allocation1 [shape = 'u32[72,128]{1,0:T(1,128)}', space=vmem, size = 0x9000, scoped, tag = 'internal scratch']
  %s0 = inlined_call_operand.vmem [shape: f32[32,128], index: 0, kind: input, shape index: {}]
  %s1 = inlined_call_operand.vmem [shape: f32[32,128], index: 1, kind: input, shape index: {}]
  %s2 = inlined_call_operand.hbm [shape: f32[32,16], index: 2, kind: output, shape index: {0}]
  %s3 = inlined_call_operand.hbm [shape: f32[2], index: 3, kind: output, shape index: {1}]
  %4 = xla_tuple %s2, %s3
  %s5 = sld [smem:[#allocation0]]
  $region26: #{affine_coupling_forward.1} parent=0
    _
  %s7 = ssub.s32 1, %s5
  %s8 = scalar_select 0, %s7, %s5
  $region1: #{affine_coupling_forward.1} parent=0
    #allocation2 [shape = 'u8[16384]{0}', space=vmem, size = 0x4000, scoped, tag = 'output window, operand 0, single buffered']
    #allocation3 [shape = 's32[1]{0}', space=sflag, size = 0x4, scoped, tag = 'scoped memory for affine_coupling_forward.1']
    #allocation4 [shape = 's32[1]{0}', space=sflag, size = 0x4, scoped, tag = 'scoped memory for affine_coupling_forward.1']
    #allocation5 [shape = 'u8[512]{0}', space=smem, size = 0x200, scoped, tag = 'output window, operand 1, single buffered']
    %9 = vsyncpa [#allocation3], 0
    %10 = vsyncpa [#allocation4], 0
    // Predicated region
    $region2: #{affine_coupling_forward.1} parent=1 // pred_check
      _
    $region3: #{affine_coupling_forward.1} parent=1 // pred_check_branch
      %12 = sbr.rel (0) target = $region5
    $region4: #{affine_coupling_forward.1} parent=1 // pred_region
      _
    $region5: #{affine_coupling_forward.1} parent=1 // pred_fallthru
      _
    // Predicated region
    $region6: #{affine_coupling_forward.1} parent=1 // pred_check
      _
    $region7: #{affine_coupling_forward.1} parent=1 // pred_check_branch
      %14 = sbr.rel (0) target = $region9
    $region8: #{affine_coupling_forward.1} parent=1 // pred_region
      _
    $region9: #{affine_coupling_forward.1} parent=1 // pred_fallthru
      _
    %v15 = vld [vmem:[%s0] sm:$0xff]
    %v16 = vld [vmem:[%s0 + $0x8] sm:$0xff]
    %v17 = vld [vmem:[%s0 + $0x10] sm:$0xff]
    %v18 = vld [vmem:[%s0 + $0x18] sm:$0xff]
    %v19 = vlaneseq
    %v20 = vshrl.u32 %v19, 7
    %v21 = vadd.s32 %v20, 8
    %v22 = vadd.s32 %v20, 16
    %v23 = vadd.s32 %v20, 24
    %v24 = vlaneseq
    %v25 = vand.u32 %v24, 127
    %v26 = vadd.s32 %v20, %v25
    %v27 = vadd.s32 %v21, %v25
    %v28 = vadd.s32 %v22, %v25
    %v29 = vadd.s32 %v23, %v25
    %v30 = vand.u32 %v26, 1
    %v31 = vand.u32 %v27, 1
    %v32 = vand.u32 %v28, 1
    %v33 = vand.u32 %v29, 1
    %vm34 = vcmp.eq.s32.totalorder %v30, 0
    %vm35 = vcmp.eq.s32.totalorder %v31, 0
    %vm36 = vcmp.eq.s32.totalorder %v32, 0
    %vm37 = vcmp.eq.s32.totalorder %v33, 0
    %v38 = vsel %vm34, 0.0, 1.0
    %v39 = vsel %vm35, 0.0, 1.0
    %v40 = vsel %vm36, 0.0, 1.0
    %v41 = vsel %vm37, 0.0, 1.0
    %v42 = vmul.f32 %v38, %v15
    %v43 = vmul.f32 %v39, %v16
    %v44 = vmul.f32 %v40, %v17
    %v45 = vmul.f32 %v41, %v18
    %v46 = vand.u32 %v20, 15
    %v47 = vand.u32 %v21, 15
    %v48 = vand.u32 %v22, 15
    %v49 = vand.u32 %v23, 15
    %vm50 = vcmp.ne.s32.totalorder %v46, 0
    %vm51 = vcmp.ne.s32.totalorder %v47, 0
    %vm52 = vcmp.ne.s32.totalorder %v48, 0
    %vm53 = vcmp.ne.s32.totalorder %v49, 0
    %vm54 = vcmp.ne.s32.totalorder %v46, 15
    %vm55 = vcmp.ne.s32.totalorder %v47, 15
    %vm56 = vcmp.ne.s32.totalorder %v48, 15
    %vm57 = vcmp.ne.s32.totalorder %v49, 15
    %v58 = vrot.slane %v42, 7
    %v59 = vrot.slane %v43, 7
    %v60 = vrot.slane %v44, 7
    %v61 = vrot.slane %v45, 7
    %vm62 = vcmp.lt.s32.totalorder %v20, 1
    %v63 = vsel %vm62, %v60, %v61
    %v64 = vsel %vm62, %v59, %v60
    %v65 = vsel %vm62, %v58, %v59
    %v66 = vsel %vm62, %v61, %v58
    %v67 = vsel %vm50, %v66, 0.0
    %v68 = vsel %vm51, %v65, 0.0
    %v69 = vsel %vm52, %v64, 0.0
    %v70 = vsel %vm53, %v63, 0.0
    %v71 = vrot.slane %v42, 1
    %v72 = vrot.slane %v43, 1
    %v73 = vrot.slane %v44, 1
    %v74 = vrot.slane %v45, 1
    %vm75 = vcmp.lt.s32.totalorder %v20, 7
    %v76 = vsel %vm75, %v73, %v74
    %v77 = vsel %vm75, %v72, %v73
    %v78 = vsel %vm75, %v71, %v72
    %v79 = vsel %vm75, %v74, %v71
    %v80 = vsel %vm54, %v78, 0.0
    %v81 = vsel %vm55, %v77, 0.0
    %v82 = vsel %vm56, %v76, 0.0
    %v83 = vsel %vm57, %v79, 0.0
    %84 = vrot.lane.b32.xlu0 %v67, 1
    %v85 = vpop.permute.xlu0 %84
    %86 = vrot.lane.b32.xlu0 %v68, 1
    %v87 = vpop.permute.xlu0 %86
    %88 = vrot.lane.b32.xlu0 %v69, 1
    %v89 = vpop.permute.xlu0 %88
    %90 = vrot.lane.b32.xlu0 %v70, 1
    %v91 = vpop.permute.xlu0 %90
    %v92 = vld [vmem:[%s1] sm:$0x1]
    %v93 = vperm.slane %v92, 0
    %v94 = vmul.f32 %v85, %v93
    %v95 = vmul.f32 %v87, %v93
    %v96 = vmul.f32 %v89, %v93
    %v97 = vmul.f32 %v91, %v93
    %v98 = vld [vmem:[%s1 + $0x1] sm:$0x1]
    %v99 = vperm.slane %v98, 0
    %v100 = vmul.f32 %v67, %v99
    %v101 = vmul.f32 %v68, %v99
    %v102 = vmul.f32 %v69, %v99
    %v103 = vmul.f32 %v70, %v99
    %104 = vrot.lane.b32.xlu0 %v67, 127
    %v105 = vpop.permute.xlu0 %104
    %106 = vrot.lane.b32.xlu0 %v68, 127
    %v107 = vpop.permute.xlu0 %106
    %108 = vrot.lane.b32.xlu0 %v69, 127
    %v109 = vpop.permute.xlu0 %108
    %110 = vrot.lane.b32.xlu0 %v70, 127
    %v111 = vpop.permute.xlu0 %110
    %v112 = vld [vmem:[%s1 + $0x2] sm:$0x1]
    %v113 = vperm.slane %v112, 0
    %v114 = vmul.f32 %v105, %v113
    %v115 = vmul.f32 %v107, %v113
    %v116 = vmul.f32 %v109, %v113
    %v117 = vmul.f32 %v111, %v113
    %118 = vrot.lane.b32.xlu0 %v42, 1
    %v119 = vpop.permute.xlu0 %118
    %120 = vrot.lane.b32.xlu0 %v43, 1
    %v121 = vpop.permute.xlu0 %120
    %122 = vrot.lane.b32.xlu0 %v44, 1
    %v123 = vpop.permute.xlu0 %122
    %124 = vrot.lane.b32.xlu0 %v45, 1
    %v125 = vpop.permute.xlu0 %124
    %v126 = vld [vmem:[%s1 + $0x3] sm:$0x1]
    %v127 = vperm.slane %v126, 0
    %v128 = vmul.f32 %v119, %v127
    %v129 = vmul.f32 %v121, %v127
    %v130 = vmul.f32 %v123, %v127
    %v131 = vmul.f32 %v125, %v127
    %v132 = vld [vmem:[%s1 + $0x4] sm:$0x1]
    %v133 = vperm.slane %v132, 0
    %v134 = vmul.f32 %v42, %v133
    %v135 = vmul.f32 %v43, %v133
    %v136 = vmul.f32 %v44, %v133
    %v137 = vmul.f32 %v45, %v133
    %138 = vrot.lane.b32.xlu0 %v42, 127
    %v139 = vpop.permute.xlu0 %138
    %140 = vrot.lane.b32.xlu0 %v43, 127
    %v141 = vpop.permute.xlu0 %140
    %142 = vrot.lane.b32.xlu0 %v44, 127
    %v143 = vpop.permute.xlu0 %142
    %144 = vrot.lane.b32.xlu0 %v45, 127
    %v145 = vpop.permute.xlu0 %144
    %v146 = vld [vmem:[%s1 + $0x5] sm:$0x1]
    %v147 = vperm.slane %v146, 0
    %v148 = vmul.f32 %v139, %v147
    %v149 = vmul.f32 %v141, %v147
    %v150 = vmul.f32 %v143, %v147
    %v151 = vmul.f32 %v145, %v147
    %152 = vrot.lane.b32.xlu0 %v80, 1
    %v153 = vpop.permute.xlu0 %152
    %154 = vrot.lane.b32.xlu0 %v81, 1
    %v155 = vpop.permute.xlu0 %154
    %156 = vrot.lane.b32.xlu0 %v82, 1
    %v157 = vpop.permute.xlu0 %156
    %158 = vrot.lane.b32.xlu0 %v83, 1
    %v159 = vpop.permute.xlu0 %158
    %v160 = vld [vmem:[%s1 + $0x6] sm:$0x1]
    %v161 = vperm.slane %v160, 0
    %v162 = vmul.f32 %v153, %v161
    %v163 = vmul.f32 %v155, %v161
    %v164 = vmul.f32 %v157, %v161
    %v165 = vmul.f32 %v159, %v161
    %v166 = vld [vmem:[%s1 + $0x7] sm:$0x1]
    %v167 = vperm.slane %v166, 0
    %v168 = vmul.f32 %v80, %v167
    %v169 = vmul.f32 %v81, %v167
    %v170 = vmul.f32 %v82, %v167
    %v171 = vmul.f32 %v83, %v167
    %172 = vrot.lane.b32.xlu0 %v80, 127
    %v173 = vpop.permute.xlu0 %172
    %174 = vrot.lane.b32.xlu0 %v81, 127
    %v175 = vpop.permute.xlu0 %174
    %176 = vrot.lane.b32.xlu0 %v82, 127
    %v177 = vpop.permute.xlu0 %176
    %178 = vrot.lane.b32.xlu0 %v83, 127
    %v179 = vpop.permute.xlu0 %178
    %v180 = vld [vmem:[%s1 + $0x8] sm:$0x1]
    %v181 = vperm.slane %v180, 0
    %v182 = vmul.f32 %v173, %v181
    %v183 = vmul.f32 %v175, %v181
    %v184 = vmul.f32 %v177, %v181
    %v185 = vmul.f32 %v179, %v181
    %v186 = vadd.f32 %v94, %v100
    %v187 = vadd.f32 %v95, %v101
    %v188 = vadd.f32 %v96, %v102
    %v189 = vadd.f32 %v97, %v103
    %v190 = vadd.f32 %v114, %v128
    %v191 = vadd.f32 %v115, %v129
    %v192 = vadd.f32 %v116, %v130
    %v193 = vadd.f32 %v117, %v131
    %v194 = vadd.f32 %v134, %v148
    %v195 = vadd.f32 %v135, %v149
    %v196 = vadd.f32 %v136, %v150
    %v197 = vadd.f32 %v137, %v151
    %v198 = vadd.f32 %v162, %v168
    %v199 = vadd.f32 %v163, %v169
    %v200 = vadd.f32 %v164, %v170
    %v201 = vadd.f32 %v165, %v171
    %v202 = vadd.f32 %v186, %v190
    %v203 = vadd.f32 %v187, %v191
    %v204 = vadd.f32 %v188, %v192
    %v205 = vadd.f32 %v189, %v193
    %v206 = vadd.f32 %v194, %v198
    %v207 = vadd.f32 %v195, %v199
    %v208 = vadd.f32 %v196, %v200
    %v209 = vadd.f32 %v197, %v201
    %v210 = vadd.f32 %v202, %v206
    %v211 = vadd.f32 %v203, %v207
    %v212 = vadd.f32 %v204, %v208
    %v213 = vadd.f32 %v205, %v209
    %v214 = vadd.f32 %v210, %v182
    %v215 = vadd.f32 %v211, %v183
    %v216 = vadd.f32 %v212, %v184
    %v217 = vadd.f32 %v213, %v185
    %v218 = vld [vmem:[%s1 + $0x1b] sm:$0x1]
    %v219 = vperm.slane %v218, 0
    %v220 = vadd.f32 %v214, %v219
    %v221 = vadd.f32 %v215, %v219
    %v222 = vadd.f32 %v216, %v219
    %v223 = vadd.f32 %v217, %v219
    %v224 = vtanh.pop %v220
    %v225 = vtanh.pop %v221
    %v226 = vtanh.pop %v222
    %v227 = vtanh.pop %v223
    %v228 = vrot.slane %v224, 7
    %v229 = vrot.slane %v225, 7
    %v230 = vrot.slane %v226, 7
    %v231 = vrot.slane %v227, 7
    %v232 = vsel %vm62, %v230, %v231
    %v233 = vsel %vm62, %v229, %v230
    %v234 = vsel %vm62, %v228, %v229
    %v235 = vsel %vm62, %v231, %v228
    %v236 = vsel %vm50, %v235, 0.0
    %v237 = vsel %vm51, %v234, 0.0
    %v238 = vsel %vm52, %v233, 0.0
    %v239 = vsel %vm53, %v232, 0.0
    %v240 = vrot.slane %v224, 1
    %v241 = vrot.slane %v225, 1
    %v242 = vrot.slane %v226, 1
    %v243 = vrot.slane %v227, 1
    %v244 = vsel %vm75, %v242, %v243
    %v245 = vsel %vm75, %v241, %v242
    %v246 = vsel %vm75, %v240, %v241
    %v247 = vsel %vm75, %v243, %v240
    %v248 = vsel %vm54, %v246, 0.0
    %v249 = vsel %vm55, %v245, 0.0
    %v250 = vsel %vm56, %v244, 0.0
    %v251 = vsel %vm57, %v247, 0.0
    %252 = vrot.lane.b32.xlu0 %v236, 1
    %v253 = vpop.permute.xlu0 %252
    %254 = vrot.lane.b32.xlu0 %v237, 1
    %v255 = vpop.permute.xlu0 %254
    %256 = vrot.lane.b32.xlu0 %v238, 1
    %v257 = vpop.permute.xlu0 %256
    %258 = vrot.lane.b32.xlu0 %v239, 1
    %v259 = vpop.permute.xlu0 %258
    %v260 = vld [vmem:[%s1 + $0x9] sm:$0x1]
    %v261 = vperm.slane %v260, 0
    %v262 = vmul.f32 %v253, %v261
    %v263 = vmul.f32 %v255, %v261
    %v264 = vmul.f32 %v257, %v261
    %v265 = vmul.f32 %v259, %v261
    %v266 = vld [vmem:[%s1 + $0x12] sm:$0x1]
    %v267 = vperm.slane %v266, 0
    %v268 = vmul.f32 %v253, %v267
    %v269 = vmul.f32 %v255, %v267
    %v270 = vmul.f32 %v257, %v267
    %v271 = vmul.f32 %v259, %v267
    %v272 = vld [vmem:[%s1 + $0xa] sm:$0x1]
    %v273 = vperm.slane %v272, 0
    %v274 = vmul.f32 %v236, %v273
    %v275 = vmul.f32 %v237, %v273
    %v276 = vmul.f32 %v238, %v273
    %v277 = vmul.f32 %v239, %v273
    %v278 = vld [vmem:[%s1 + $0x13] sm:$0x1]
    %v279 = vperm.slane %v278, 0
    %v280 = vmul.f32 %v236, %v279
    %v281 = vmul.f32 %v237, %v279
    %v282 = vmul.f32 %v238, %v279
    %v283 = vmul.f32 %v239, %v279
    %284 = vrot.lane.b32.xlu0 %v236, 127
    %v285 = vpop.permute.xlu0 %284
    %286 = vrot.lane.b32.xlu0 %v237, 127
    %v287 = vpop.permute.xlu0 %286
    %288 = vrot.lane.b32.xlu0 %v238, 127
    %v289 = vpop.permute.xlu0 %288
    %290 = vrot.lane.b32.xlu0 %v239, 127
    %v291 = vpop.permute.xlu0 %290
    %v292 = vld [vmem:[%s1 + $0xb] sm:$0x1]
    %v293 = vperm.slane %v292, 0
    %v294 = vmul.f32 %v285, %v293
    %v295 = vmul.f32 %v287, %v293
    %v296 = vmul.f32 %v289, %v293
    %v297 = vmul.f32 %v291, %v293
    %v298 = vld [vmem:[%s1 + $0x14] sm:$0x1]
    %v299 = vperm.slane %v298, 0
    %v300 = vmul.f32 %v285, %v299
    %v301 = vmul.f32 %v287, %v299
    %v302 = vmul.f32 %v289, %v299
    %v303 = vmul.f32 %v291, %v299
    %304 = vrot.lane.b32.xlu0 %v224, 1
    %v305 = vpop.permute.xlu0 %304
    %306 = vrot.lane.b32.xlu0 %v225, 1
    %v307 = vpop.permute.xlu0 %306
    %308 = vrot.lane.b32.xlu0 %v226, 1
    %v309 = vpop.permute.xlu0 %308
    %310 = vrot.lane.b32.xlu0 %v227, 1
    %v311 = vpop.permute.xlu0 %310
    %v312 = vld [vmem:[%s1 + $0xc] sm:$0x1]
    %v313 = vperm.slane %v312, 0
    %v314 = vmul.f32 %v305, %v313
    %v315 = vmul.f32 %v307, %v313
    %v316 = vmul.f32 %v309, %v313
    %v317 = vmul.f32 %v311, %v313
    %v318 = vld [vmem:[%s1 + $0x15] sm:$0x1]
    %v319 = vperm.slane %v318, 0
    %v320 = vmul.f32 %v305, %v319
    %v321 = vmul.f32 %v307, %v319
    %v322 = vmul.f32 %v309, %v319
    %v323 = vmul.f32 %v311, %v319
    %v324 = vld [vmem:[%s1 + $0xd] sm:$0x1]
    %v325 = vperm.slane %v324, 0
    %v326 = vmul.f32 %v224, %v325
    %v327 = vmul.f32 %v225, %v325
    %v328 = vmul.f32 %v226, %v325
    %v329 = vmul.f32 %v227, %v325
    %v330 = vld [vmem:[%s1 + $0x16] sm:$0x1]
    %v331 = vperm.slane %v330, 0
    %v332 = vmul.f32 %v224, %v331
    %v333 = vmul.f32 %v225, %v331
    %v334 = vmul.f32 %v226, %v331
    %v335 = vmul.f32 %v227, %v331
    %336 = vrot.lane.b32.xlu0 %v224, 127
    %v337 = vpop.permute.xlu0 %336
    %338 = vrot.lane.b32.xlu0 %v225, 127
    %v339 = vpop.permute.xlu0 %338
    %340 = vrot.lane.b32.xlu0 %v226, 127
    %v341 = vpop.permute.xlu0 %340
    %342 = vrot.lane.b32.xlu0 %v227, 127
    %v343 = vpop.permute.xlu0 %342
    %v344 = vld [vmem:[%s1 + $0xe] sm:$0x1]
    %v345 = vperm.slane %v344, 0
    %v346 = vmul.f32 %v337, %v345
    %v347 = vmul.f32 %v339, %v345
    %v348 = vmul.f32 %v341, %v345
    %v349 = vmul.f32 %v343, %v345
    %v350 = vld [vmem:[%s1 + $0x17] sm:$0x1]
    %v351 = vperm.slane %v350, 0
    %v352 = vmul.f32 %v337, %v351
    %v353 = vmul.f32 %v339, %v351
    %v354 = vmul.f32 %v341, %v351
    %v355 = vmul.f32 %v343, %v351
    %356 = vrot.lane.b32.xlu0 %v248, 1
    %v357 = vpop.permute.xlu0 %356
    %358 = vrot.lane.b32.xlu0 %v249, 1
    %v359 = vpop.permute.xlu0 %358
    %360 = vrot.lane.b32.xlu0 %v250, 1
    %v361 = vpop.permute.xlu0 %360
    %362 = vrot.lane.b32.xlu0 %v251, 1
    %v363 = vpop.permute.xlu0 %362
    %v364 = vld [vmem:[%s1 + $0xf] sm:$0x1]
    %v365 = vperm.slane %v364, 0
    %v366 = vmul.f32 %v357, %v365
    %v367 = vmul.f32 %v359, %v365
    %v368 = vmul.f32 %v361, %v365
    %v369 = vmul.f32 %v363, %v365
    %v370 = vld [vmem:[%s1 + $0x18] sm:$0x1]
    %v371 = vperm.slane %v370, 0
    %v372 = vmul.f32 %v357, %v371
    %v373 = vmul.f32 %v359, %v371
    %v374 = vmul.f32 %v361, %v371
    %v375 = vmul.f32 %v363, %v371
    %v376 = vld [vmem:[%s1 + $0x10] sm:$0x1]
    %v377 = vperm.slane %v376, 0
    %v378 = vmul.f32 %v248, %v377
    %v379 = vmul.f32 %v249, %v377
    %v380 = vmul.f32 %v250, %v377
    %v381 = vmul.f32 %v251, %v377
    %v382 = vld [vmem:[%s1 + $0x19] sm:$0x1]
    %v383 = vperm.slane %v382, 0
    %v384 = vmul.f32 %v248, %v383
    %v385 = vmul.f32 %v249, %v383
    %v386 = vmul.f32 %v250, %v383
    %v387 = vmul.f32 %v251, %v383
    %388 = vrot.lane.b32.xlu0 %v248, 127
    %v389 = vpop.permute.xlu0 %388
    %390 = vrot.lane.b32.xlu0 %v249, 127
    %v391 = vpop.permute.xlu0 %390
    %392 = vrot.lane.b32.xlu0 %v250, 127
    %v393 = vpop.permute.xlu0 %392
    %394 = vrot.lane.b32.xlu0 %v251, 127
    %v395 = vpop.permute.xlu0 %394
    %v396 = vld [vmem:[%s1 + $0x11] sm:$0x1]
    %v397 = vperm.slane %v396, 0
    %v398 = vmul.f32 %v389, %v397
    %v399 = vmul.f32 %v391, %v397
    %v400 = vmul.f32 %v393, %v397
    %v401 = vmul.f32 %v395, %v397
    %v402 = vld [vmem:[%s1 + $0x1a] sm:$0x1]
    %v403 = vperm.slane %v402, 0
    %v404 = vmul.f32 %v389, %v403
    %v405 = vmul.f32 %v391, %v403
    %v406 = vmul.f32 %v393, %v403
    %v407 = vmul.f32 %v395, %v403
    %v408 = vadd.f32 %v262, %v274
    %v409 = vadd.f32 %v263, %v275
    %v410 = vadd.f32 %v264, %v276
    %v411 = vadd.f32 %v265, %v277
    %v412 = vadd.f32 %v294, %v314
    %v413 = vadd.f32 %v295, %v315
    %v414 = vadd.f32 %v296, %v316
    %v415 = vadd.f32 %v297, %v317
    %v416 = vadd.f32 %v326, %v346
    %v417 = vadd.f32 %v327, %v347
    %v418 = vadd.f32 %v328, %v348
    %v419 = vadd.f32 %v329, %v349
    %v420 = vadd.f32 %v366, %v378
    %v421 = vadd.f32 %v367, %v379
    %v422 = vadd.f32 %v368, %v380
    %v423 = vadd.f32 %v369, %v381
    %v424 = vadd.f32 %v408, %v412
    %v425 = vadd.f32 %v409, %v413
    %v426 = vadd.f32 %v410, %v414
    %v427 = vadd.f32 %v411, %v415
    %v428 = vadd.f32 %v416, %v420
    %v429 = vadd.f32 %v417, %v421
    %v430 = vadd.f32 %v418, %v422
    %v431 = vadd.f32 %v419, %v423
    %v432 = vadd.f32 %v424, %v428
    %v433 = vadd.f32 %v425, %v429
    %v434 = vadd.f32 %v426, %v430
    %v435 = vadd.f32 %v427, %v431
    %v436 = vadd.f32 %v432, %v398
    %v437 = vadd.f32 %v433, %v399
    %v438 = vadd.f32 %v434, %v400
    %v439 = vadd.f32 %v435, %v401
    %v440 = vadd.f32 %v268, %v280
    %v441 = vadd.f32 %v269, %v281
    %v442 = vadd.f32 %v270, %v282
    %v443 = vadd.f32 %v271, %v283
    %v444 = vadd.f32 %v300, %v320
    %v445 = vadd.f32 %v301, %v321
    %v446 = vadd.f32 %v302, %v322
    %v447 = vadd.f32 %v303, %v323
    %v448 = vadd.f32 %v332, %v352
    %v449 = vadd.f32 %v333, %v353
    %v450 = vadd.f32 %v334, %v354
    %v451 = vadd.f32 %v335, %v355
    %v452 = vadd.f32 %v372, %v384
    %v453 = vadd.f32 %v373, %v385
    %v454 = vadd.f32 %v374, %v386
    %v455 = vadd.f32 %v375, %v387
    %v456 = vadd.f32 %v440, %v444
    %v457 = vadd.f32 %v441, %v445
    %v458 = vadd.f32 %v442, %v446
    %v459 = vadd.f32 %v443, %v447
    %v460 = vadd.f32 %v448, %v452
    %v461 = vadd.f32 %v449, %v453
    %v462 = vadd.f32 %v450, %v454
    %v463 = vadd.f32 %v451, %v455
    %v464 = vadd.f32 %v456, %v460
    %v465 = vadd.f32 %v457, %v461
    %v466 = vadd.f32 %v458, %v462
    %v467 = vadd.f32 %v459, %v463
    %v468 = vadd.f32 %v464, %v404
    %v469 = vadd.f32 %v465, %v405
    %v470 = vadd.f32 %v466, %v406
    %v471 = vadd.f32 %v467, %v407
    %472 = vrot.lane.b32.xlu0 %v436, 64
    %v473 = vpop.permute.xlu0 %472
    %474 = vrot.lane.b32.xlu0 %v437, 64
    %v475 = vpop.permute.xlu0 %474
    %476 = vrot.lane.b32.xlu0 %v438, 64
    %v477 = vpop.permute.xlu0 %476
    %478 = vrot.lane.b32.xlu0 %v439, 64
    %v479 = vpop.permute.xlu0 %478
    %v480 = vadd.f32 %v436, %v473
    %v481 = vadd.f32 %v437, %v475
    %v482 = vadd.f32 %v438, %v477
    %v483 = vadd.f32 %v439, %v479
    %484 = vrot.lane.b32.xlu0 %v480, 32
    %v485 = vpop.permute.xlu0 %484
    %486 = vrot.lane.b32.xlu0 %v481, 32
    %v487 = vpop.permute.xlu0 %486
    %488 = vrot.lane.b32.xlu0 %v482, 32
    %v489 = vpop.permute.xlu0 %488
    %490 = vrot.lane.b32.xlu0 %v483, 32
    %v491 = vpop.permute.xlu0 %490
    %v492 = vadd.f32 %v480, %v485
    %v493 = vadd.f32 %v481, %v487
    %v494 = vadd.f32 %v482, %v489
    %v495 = vadd.f32 %v483, %v491
    %496 = vrot.lane.b32.xlu0 %v492, 16
    %v497 = vpop.permute.xlu0 %496
    %498 = vrot.lane.b32.xlu0 %v493, 16
    %v499 = vpop.permute.xlu0 %498
    %500 = vrot.lane.b32.xlu0 %v494, 16
    %v501 = vpop.permute.xlu0 %500
    %502 = vrot.lane.b32.xlu0 %v495, 16
    %v503 = vpop.permute.xlu0 %502
    %v504 = vadd.f32 %v492, %v497
    %v505 = vadd.f32 %v493, %v499
    %v506 = vadd.f32 %v494, %v501
    %v507 = vadd.f32 %v495, %v503
    %v508 = vld [vmem:[%s1 + $0x1c] sm:$0x1]
    %v509 = vperm.slane %v508, 0
    %v510 = vadd.f32 %v504, %v509
    %v511 = vadd.f32 %v505, %v509
    %v512 = vadd.f32 %v506, %v509
    %v513 = vadd.f32 %v507, %v509
    %514 = vrot.lane.b32.xlu0 %v468, 64
    %v515 = vpop.permute.xlu0 %514
    %516 = vrot.lane.b32.xlu0 %v469, 64
    %v517 = vpop.permute.xlu0 %516
    %518 = vrot.lane.b32.xlu0 %v470, 64
    %v519 = vpop.permute.xlu0 %518
    %520 = vrot.lane.b32.xlu0 %v471, 64
    %v521 = vpop.permute.xlu0 %520
    %v522 = vadd.f32 %v468, %v515
    %v523 = vadd.f32 %v469, %v517
    %v524 = vadd.f32 %v470, %v519
    %v525 = vadd.f32 %v471, %v521
    %526 = vrot.lane.b32.xlu0 %v522, 32
    %v527 = vpop.permute.xlu0 %526
    %528 = vrot.lane.b32.xlu0 %v523, 32
    %v529 = vpop.permute.xlu0 %528
    %530 = vrot.lane.b32.xlu0 %v524, 32
    %v531 = vpop.permute.xlu0 %530
    %532 = vrot.lane.b32.xlu0 %v525, 32
    %v533 = vpop.permute.xlu0 %532
    %v534 = vadd.f32 %v522, %v527
    %v535 = vadd.f32 %v523, %v529
    %v536 = vadd.f32 %v524, %v531
    %v537 = vadd.f32 %v525, %v533
    %538 = vrot.lane.b32.xlu0 %v534, 16
    %v539 = vpop.permute.xlu0 %538
    %540 = vrot.lane.b32.xlu0 %v535, 16
    %v541 = vpop.permute.xlu0 %540
    %542 = vrot.lane.b32.xlu0 %v536, 16
    %v543 = vpop.permute.xlu0 %542
    %544 = vrot.lane.b32.xlu0 %v537, 16
    %v545 = vpop.permute.xlu0 %544
    %v546 = vadd.f32 %v534, %v539
    %v547 = vadd.f32 %v535, %v541
    %v548 = vadd.f32 %v536, %v543
    %v549 = vadd.f32 %v537, %v545
    %v550 = vld [vmem:[%s1 + $0x1d] sm:$0x1]
    %v551 = vperm.slane %v550, 0
    %v552 = vadd.f32 %v546, %v551
    %v553 = vadd.f32 %v547, %v551
    %v554 = vadd.f32 %v548, %v551
    %v555 = vadd.f32 %v549, %v551
    %v556 = vsub.f32 1.0, %v38
    %v557 = vsub.f32 1.0, %v39
    %v558 = vsub.f32 1.0, %v40
    %v559 = vsub.f32 1.0, %v41
    %v560 = vmul.f32 %v556, %v552
    %v561 = vmul.f32 %v557, %v553
    %v562 = vmul.f32 %v558, %v554
    %v563 = vmul.f32 %v559, %v555
    %v564 = vmul.f32 %v556, %v15
    %v565 = vmul.f32 %v557, %v16
    %v566 = vmul.f32 %v558, %v17
    %v567 = vmul.f32 %v559, %v18
    %v568 = vmul.f32 %v510, 1.442695
    %v569 = vpow.pop %v568
    %v570 = vmul.f32 %v511, 1.442695
    %v571 = vpow.pop %v570
    %v572 = vmul.f32 %v512, 1.442695
    %v573 = vpow.pop %v572
    %v574 = vmul.f32 %v513, 1.442695
    %v575 = vpow.pop %v574
    %v576 = vmul.f32 %v564, %v569
    %v577 = vmul.f32 %v565, %v571
    %v578 = vmul.f32 %v566, %v573
    %v579 = vmul.f32 %v567, %v575
    %v580 = vadd.f32 %v560, %v576
    %v581 = vadd.f32 %v561, %v577
    %v582 = vadd.f32 %v562, %v578
    %v583 = vadd.f32 %v563, %v579
    %v584 = vadd.f32 %v580, %v42
    %v585 = vadd.f32 %v581, %v43
    %v586 = vadd.f32 %v582, %v44
    %v587 = vadd.f32 %v583, %v45
    %vm588 = vcmask 130048
    %589 = vst.msk [vmem:[#allocation2] sm:$0xff] %vm588, %v584
    %590 = vst.msk [vmem:[#allocation2 + $0x8] sm:$0xff] %vm588, %v585
    %591 = vst.msk [vmem:[#allocation2 + $0x10] sm:$0xff] %vm588, %v586
    %592 = vst.msk [vmem:[#allocation2 + $0x18] sm:$0xff] %vm588, %v587
    %v593 = vmul.f32 %v556, %v510
    %v594 = vmul.f32 %v557, %v511
    %v595 = vmul.f32 %v558, %v512
    %v596 = vmul.f32 %v559, %v513
    %v597 = vsel %vm588, %v593, 0.0
    %v598 = vsel %vm588, %v594, 0.0
    %v599 = vadd.f32 %v597, %v598
    %600 = vadd.xlane.f32.xlu0 %v599
    %v601 = vpop.xlane.xlu0 %600
    %v602 = vrot.slane %v601, 4
    %v603 = vadd.f32 %v601, %v602
    %v604 = vrot.slane %v603, 2
    %v605 = vadd.f32 %v603, %v604
    %v606 = vrot.slane %v605, 1
    %v607 = vadd.f32 %v605, %v606
    %s608 = vtos %v607
    %s609 = scalar_lea.smem [#allocation5], 0
    %610 = sst [smem:[%s609]] %s608
    %v611 = vsel %vm588, %v595, 0.0
    %v612 = vsel %vm588, %v596, 0.0
    %v613 = vadd.f32 %v611, %v612
    %614 = vadd.xlane.f32.xlu0 %v613
    %v615 = vpop.xlane.xlu0 %614
    %v616 = vrot.slane %v615, 4
    %v617 = vadd.f32 %v615, %v616
    %v618 = vrot.slane %v617, 2
    %v619 = vadd.f32 %v617, %v618
    %v620 = vrot.slane %v619, 1
    %v621 = vadd.f32 %v619, %v620
    %s622 = vtos %v621
    %s623 = scalar_lea.smem [#allocation5], 1
    %624 = sst [smem:[%s623]] %s622
    // Predicated region
    $region10: #{affine_coupling_forward.1} parent=1 // pred_check
      _
    $region11: #{affine_coupling_forward.1} parent=1 // pred_check_branch
      %626 = sbr.rel (0) target = $region13
    $region12: #{affine_coupling_forward.1} parent=1 // pred_region
      %628 = vsyncadd [#allocation3], 0
      %s629 = sshll.u32 [#allocation2], 4
      %s630 = int_to_ptr.vmem [resolvable:$true] %s629
      %s631 = sshll.u32 %s2, 4
      %s632 = int_to_ptr.hbm [resolvable:$true] %s631
      %637 = dma.vmem_to_hbm [thread:$0]  %s630, 512, %s632, [#allocation3], 128, 128, 8
    $region13: #{affine_coupling_forward.1} parent=1 // pred_fallthru
      _
    // Predicated region
    $region14: #{affine_coupling_forward.1} parent=1 // pred_check
      _
    $region15: #{affine_coupling_forward.1} parent=1 // pred_check_branch
      %639 = sbr.rel (0) target = $region17
    $region16: #{affine_coupling_forward.1} parent=1 // pred_region
      %641 = vsyncadd [#allocation4], 0
      %s643 = sshll.u32 %s3, 4
      %s644 = int_to_ptr.hbm [resolvable:$true] %s643
      %646 = dma.smem_to_hbm [#allocation5], 16, %s644, [#allocation4]
    $region17: #{affine_coupling_forward.1} parent=1 // pred_fallthru
      _
    // Predicated region
    $region18: #{affine_coupling_forward.1} parent=1 // pred_check
      _
    $region19: #{affine_coupling_forward.1} parent=1 // pred_check_branch
      %648 = sbr.rel (0) target = $region21
    $region20: #{affine_coupling_forward.1} parent=1 // pred_region
      %650 = dma.done [#allocation3], 512
    $region21: #{affine_coupling_forward.1} parent=1 // pred_fallthru
      _
    // Predicated region
    $region22: #{affine_coupling_forward.1} parent=1 // pred_check
      _
    $region23: #{affine_coupling_forward.1} parent=1 // pred_check_branch
      %652 = sbr.rel (0) target = $region25
    $region24: #{affine_coupling_forward.1} parent=1 // pred_region
      %654 = dma.done [#allocation4], 16
    $region25: #{affine_coupling_forward.1} parent=1 // pred_fallthru
      _
    %655 = sfence
    %656 = vsyncpa [#allocation3], 1
    %657 = vsyncpa [#allocation4], 1

</llo_original>
